<compile_context>
chip_gen: v7x
topology: tpu7x:2x2x1
jax: 0.10.0
libtpu: 0.0.40
codegen_flags: <defaults>
</compile_context>

<pallas_src>
import math

import jax
import jax.numpy as jnp
from jax.experimental import pallas as pl
from jax.experimental.pallas import tpu as pltpu


def _round_up(x, m):
    return ((x + m - 1) // m) * m


def _quadratic_kernel(xt_ref, w1_ref, w2_ref, w3_ref, o_ref):
    # xt_ref: (F_pad, TM)  features (+ ones row for bias + zero pad) x row-lanes
    # w*_ref: (1, F_pad)   [w_i, b_i, 0...]
    # o_ref : (1, TM)      lane-dense output row tile
    xt = xt_ref[...]
    xsq = xt * xt                      # ones row stays 1, zero padding stays 0
    dn = (((1,), (0,)), ((), ()))
    y1 = jax.lax.dot_general(w1_ref[...], xt, dn,
                             preferred_element_type=jnp.float32)   # (1, TM)
    y2 = jax.lax.dot_general(w2_ref[...], xt, dn,
                             preferred_element_type=jnp.float32)   # (1, TM)
    y3 = jax.lax.dot_general(w3_ref[...], xsq, dn,
                             preferred_element_type=jnp.float32)   # (1, TM)
    o_ref[...] = (y1 * y2 + y3).astype(o_ref.dtype)


def quadratic_forward(x, w1, b1, w2, b2, w3, b3, *, max_tile=1024):
    """Pallas implementation of Quadratic.forward.

    x: (..., F); w_i: (1, F) PyTorch-Linear weights; b_i: (1,) biases.
    Returns (...,) = (x@w1.T+b1)*(x@w2.T+b2) + (x^2@w3.T+b3), last dim squeezed.
    """
    *batch_dims, F = x.shape
    batch_dims = tuple(batch_dims)
    M = math.prod(batch_dims) if batch_dims else 1

    # ---- layout glue in the wrapper (transposed, lane-dense) ----
    F_aug = F + 1                              # +1 row of ones folds the bias
    F_pad = _round_up(F_aug, 8)                # sublane multiple
    TM = min(_round_up(max(M, 1), 128), max_tile)
    M_pad = _round_up(max(M, 1), TM)

    x2d = x.reshape(M, F).astype(jnp.float32)
    xt = jnp.zeros((F_pad, M_pad), dtype=jnp.float32)
    xt = xt.at[:F, :M].set(x2d.T)
    xt = xt.at[F, :].set(1.0)                  # bias row (1^2 == 1 for linear3)

    def prep_w(w, b):
        wf = jnp.zeros((1, F_pad), dtype=jnp.float32)
        wf = wf.at[0, :F].set(w.reshape(F).astype(jnp.float32))
        wf = wf.at[0, F].set(b.reshape(()).astype(jnp.float32))
        return wf

    w1p, w2p, w3p = prep_w(w1, b1), prep_w(w2, b2), prep_w(w3, b3)

    out2d = pl.pallas_call(
        _quadratic_kernel,
        out_shape=jax.ShapeDtypeStruct((1, M_pad), jnp.float32),
        grid_spec=pltpu.PrefetchScalarGridSpec(
            num_scalar_prefetch=0,
            grid=(M_pad // TM,),
            in_specs=[
                pl.BlockSpec((F_pad, TM), lambda i: (0, i)),
                pl.BlockSpec((1, F_pad), lambda i: (0, 0)),
                pl.BlockSpec((1, F_pad), lambda i: (0, 0)),
                pl.BlockSpec((1, F_pad), lambda i: (0, 0)),
            ],
            out_specs=pl.BlockSpec((1, TM), lambda i: (0, i)),
        ),
        compiler_params=pltpu.CompilerParams(
            dimension_semantics=("parallel",),
        ),
    )(xt, w1p, w2p, w3p)

    out = out2d[0, :M].reshape(batch_dims)
    return out.astype(x.dtype)


if __name__ == "__main__":
    key = jax.random.PRNGKey(0)
    k_x, k_w1, k_b1, k_w2, k_b2, k_w3, k_b3 = jax.random.split(key, 7)

    B, S, F = 2, 8, 32
    x = jax.random.normal(k_x, (B, S, F), dtype=jnp.float32)

    # Deterministic init mimicking nn.Linear default (uniform +-1/sqrt(fan_in)).
    bound = 1.0 / (F ** 0.5)

    def init_linear(kw, kb):
        w = jax.random.uniform(kw, (1, F), jnp.float32, -bound, bound)
        b = jax.random.uniform(kb, (1,), jnp.float32, -bound, bound)
        return w, b

    w1, b1 = init_linear(k_w1, k_b1)
    w2, b2 = init_linear(k_w2, k_b2)
    w3, b3 = init_linear(k_w3, k_b3)

    out = quadratic_forward(x, w1, b1, w2, b2, w3, b3)
    out = jax.block_until_ready(out)

    # Pure-JAX reference of the PyTorch forward.
    ref = ((x @ w1.T + b1) * (x @ w2.T + b2) + ((x * x) @ w3.T + b3))[..., 0]
    assert out.shape == (B, S)
    assert jnp.allclose(out, ref, atol=1e-5, rtol=1e-5), float(
        jnp.max(jnp.abs(out - ref)))

    print("KERNEL_OK")
</pallas_src>

<mosaic_0001>
module attributes {stable_mosaic.version = 11 : i64} {
  func.func @_quadratic_kernel(%arg0: i32, %arg1: memref<40x128xf32, #tpu.memory_space<vmem>>, %arg2: memref<1x40xf32, #tpu.memory_space<vmem>>, %arg3: memref<1x40xf32, #tpu.memory_space<vmem>>, %arg4: memref<1x40xf32, #tpu.memory_space<vmem>>, %arg5: memref<1x128xf32, #tpu.memory_space<vmem>>) attributes {dimension_semantics = [#tpu.dimension_semantics<parallel>], iteration_bounds = array<i64: 1>, scalar_prefetch = 0 : i64, scratch_operands = 0 : i64, tpu.core_type = #tpu.core_type<tc>, window_params = [{transform_indices = @transform_0, window_bounds = array<i64: 40, 128>}, {pipeline_mode = #tpu.pipeline_mode<synchronous>, transform_indices = @transform_1, window_bounds = array<i64: 1, 40>}, {pipeline_mode = #tpu.pipeline_mode<synchronous>, transform_indices = @transform_2, window_bounds = array<i64: 1, 40>}, {pipeline_mode = #tpu.pipeline_mode<synchronous>, transform_indices = @transform_3, window_bounds = array<i64: 1, 40>}, {transform_indices = @transform_4, window_bounds = array<i64: 1, 128>}]} {
    %c0 = arith.constant 0 : index
    %c0_0 = arith.constant 0 : index
    %0 = vector.load %arg1[%c0, %c0_0] : memref<40x128xf32, #tpu.memory_space<vmem>>, vector<40x128xf32>
    %1 = arith.mulf %0, %0 : vector<40x128xf32>
    %c0_1 = arith.constant 0 : index
    %c0_2 = arith.constant 0 : index
    %2 = vector.load %arg2[%c0_1, %c0_2] : memref<1x40xf32, #tpu.memory_space<vmem>>, vector<1x40xf32>
    %cst = arith.constant dense<0.000000e+00> : vector<1x128xf32>
    %3 = tpu.matmul %2, %0, %cst {dimension_numbers = #tpu.dot_dimension_numbers<[1], [0], [0], [1], [0, 0, 1, 1], [], []>} : vector<1x40xf32>, vector<40x128xf32>, vector<1x128xf32> -> vector<1x128xf32>
    %c0_3 = arith.constant 0 : index
    %c0_4 = arith.constant 0 : index
    %4 = vector.load %arg3[%c0_3, %c0_4] : memref<1x40xf32, #tpu.memory_space<vmem>>, vector<1x40xf32>
    %cst_5 = arith.constant dense<0.000000e+00> : vector<1x128xf32>
    %5 = tpu.matmul %4, %0, %cst_5 {dimension_numbers = #tpu.dot_dimension_numbers<[1], [0], [0], [1], [0, 0, 1, 1], [], []>} : vector<1x40xf32>, vector<40x128xf32>, vector<1x128xf32> -> vector<1x128xf32>
    %c0_6 = arith.constant 0 : index
    %c0_7 = arith.constant 0 : index
    %6 = vector.load %arg4[%c0_6, %c0_7] : memref<1x40xf32, #tpu.memory_space<vmem>>, vector<1x40xf32>
    %cst_8 = arith.constant dense<0.000000e+00> : vector<1x128xf32>
    %7 = tpu.matmul %6, %1, %cst_8 {dimension_numbers = #tpu.dot_dimension_numbers<[1], [0], [0], [1], [0, 0, 1, 1], [], []>} : vector<1x40xf32>, vector<40x128xf32>, vector<1x128xf32> -> vector<1x128xf32>
    %8 = arith.mulf %3, %5 : vector<1x128xf32>
    %9 = arith.addf %8, %7 : vector<1x128xf32>
    %c0_9 = arith.constant 0 : index
    %c0_10 = arith.constant 0 : index
    %10 = vector.load %arg5[%c0_9, %c0_10] : memref<1x128xf32, #tpu.memory_space<vmem>>, vector<1x128xf32>
    tpu.vector_store %arg5[%c0_9, %c0_10], %9 {strides = array<i32>} : memref<1x128xf32, #tpu.memory_space<vmem>>, vector<1x128xf32>,
    return
  }
  func.func @transform_0(%arg0: i32) -> (i32, i32) {
    %c0_i32 = arith.constant 0 : i32
    %c0_i32_0 = arith.constant 0 : i32
    return %c0_i32, %arg0 : i32, i32
  }
  func.func @transform_1(%arg0: i32) -> (i32, i32) {
    %c0_i32 = arith.constant 0 : i32
    %c0_i32_0 = arith.constant 0 : i32
    %c0_i32_1 = arith.constant 0 : i32
    return %c0_i32, %c0_i32_0 : i32, i32
  }
  func.func @transform_2(%arg0: i32) -> (i32, i32) {
    %c0_i32 = arith.constant 0 : i32
    %c0_i32_0 = arith.constant 0 : i32
    %c0_i32_1 = arith.constant 0 : i32
    return %c0_i32, %c0_i32_0 : i32, i32
  }
  func.func @transform_3(%arg0: i32) -> (i32, i32) {
    %c0_i32 = arith.constant 0 : i32
    %c0_i32_0 = arith.constant 0 : i32
    %c0_i32_1 = arith.constant 0 : i32
    return %c0_i32, %c0_i32_0 : i32, i32
  }
  func.func @transform_4(%arg0: i32) -> (i32, i32) {
    %c0_i32 = arith.constant 0 : i32
    %c0_i32_0 = arith.constant 0 : i32
    return %c0_i32, %arg0 : i32, i32
  }
}

</mosaic_0001>

<llo_original>
// kernel: tpu_custom_call.1
$region0: #{tpu_custom_call.1}
  #allocation0 [shape = 'u32[]', space=smem, size = 0x4, offset = 0x4, fixed_abs, tag = 'smem constant byte address 0x4 - core index']
  #allocation1 [shape = 'u32[144,128]{1,0:T(1,128)}', space=vmem, size = 0x12000, scoped, tag = 'internal scratch']
  %s0 = inlined_call_operand.hbm [shape: f32[40,128], index: 0, kind: input, shape index: {}]
  %s1 = inlined_call_operand.vmem [shape: f32[1,40], index: 1, kind: input, shape index: {}]
  %s2 = inlined_call_operand.vmem [shape: f32[1,40], index: 2, kind: input, shape index: {}]
  %s3 = inlined_call_operand.vmem [shape: f32[1,40], index: 3, kind: input, shape index: {}]
  %s4 = inlined_call_operand.hbm [shape: f32[1,128], index: 4, kind: output, shape index: {}]
  %s5 = sld [smem:[#allocation0]]
  $region30: #{tpu_custom_call.1} parent=0
    _
  %s7 = ssub.s32 1, %s5
  %s8 = scalar_select 0, %s7, %s5
  $region1: #{tpu_custom_call.1} parent=0
    #allocation2 [shape = 'u8[20480]{0}', space=vmem, size = 0x5000, scoped, tag = 'input window, operand 0, single buffered']
    #allocation3 [shape = 's32[1]{0}', space=sflag, size = 0x4, scoped, tag = 'scoped memory for tpu_custom_call.1']
    #allocation4 [shape = 's32[1]{0}', space=sflag, size = 0x4, scoped, tag = 'scoped memory for tpu_custom_call.1']
    #allocation5 [shape = 'u8[512]{0}', space=vmem, size = 0x400, scoped, tag = 'output window, operand 0, single buffered']
    %9 = vsyncpa [#allocation3], 0
    %10 = vsyncpa [#allocation4], 0
    // Predicated region
    $region2: #{tpu_custom_call.1} parent=1 // pred_check
      _
    $region3: #{tpu_custom_call.1} parent=1 // pred_check_branch
      %12 = sbr.rel (0) target = $region5
    $region4: #{tpu_custom_call.1} parent=1 // pred_region
      %s14 = ssub.s32 640, 640
      %15 = vsyncadd [#allocation3], %s14
      %s16 = sshll.u32 [#allocation2], 4
      %s17 = int_to_ptr.vmem [resolvable:$true] %s16
      %22 = dma.hbm_to_vmem [thread:$0]  %s0, 640, %s17, [#allocation3], 128, 128, 8
    $region5: #{tpu_custom_call.1} parent=1 // pred_fallthru
      _
    // Predicated region
    $region6: #{tpu_custom_call.1} parent=1 // pred_check
      _
    $region7: #{tpu_custom_call.1} parent=1 // pred_check_branch
      %24 = sbr.rel (0) target = $region9
    $region8: #{tpu_custom_call.1} parent=1 // pred_region
      _
    $region9: #{tpu_custom_call.1} parent=1 // pred_fallthru
      _
    // Predicated region
    $region10: #{tpu_custom_call.1} parent=1 // pred_check
      _
    $region11: #{tpu_custom_call.1} parent=1 // pred_check_branch
      %26 = sbr.rel (0) target = $region13
    $region12: #{tpu_custom_call.1} parent=1 // pred_region
      _
    $region13: #{tpu_custom_call.1} parent=1 // pred_fallthru
      _
    // Predicated region
    $region14: #{tpu_custom_call.1} parent=1 // pred_check
      _
    $region15: #{tpu_custom_call.1} parent=1 // pred_check_branch
      %28 = sbr.rel (0) target = $region17
    $region16: #{tpu_custom_call.1} parent=1 // pred_region
      _
    $region17: #{tpu_custom_call.1} parent=1 // pred_fallthru
      _
    // Predicated region
    $region18: #{tpu_custom_call.1} parent=1 // pred_check
      _
    $region19: #{tpu_custom_call.1} parent=1 // pred_check_branch
      %30 = sbr.rel (0) target = $region21
    $region20: #{tpu_custom_call.1} parent=1 // pred_region
      %31 = dma.done [#allocation3], 640
    $region21: #{tpu_custom_call.1} parent=1 // pred_fallthru
      _
    %v32 = vld [vmem:[#allocation2] sm:$0xff]
    %v33 = vld [vmem:[#allocation2 + $0x8] sm:$0xff]
    %v34 = vld [vmem:[#allocation2 + $0x10] sm:$0xff]
    %v35 = vld [vmem:[#allocation2 + $0x18] sm:$0xff]
    %v36 = vld [vmem:[#allocation2 + $0x20] sm:$0xff]
    %v37 = vmul.f32 %v32, %v32
    %v38 = vmul.f32 %v33, %v33
    %v39 = vmul.f32 %v34, %v34
    %v40 = vmul.f32 %v35, %v35
    %v41 = vmul.f32 %v36, %v36
    %v42 = vld [vmem:[%s1] sm:$0x1]
    %vm43 = vcmask 326656
    %v45 = vsel %vm43, %v42, 0
    %47 = vmatprep.subr.mxu0 0.0
    %48 = vmatpush1.msra.mxu0 %v32
    %49 = vmatprep.subr.mxu0 0.0
    %50 = vmatpush1.msra.mxu0 %v33
    %51 = vmatprep.subr.mxu0 0.0
    %52 = vmatpush1.msra.mxu0 %v34
    %53 = vmatprep.subr.mxu0 0.0
    %54 = vmatpush1.msra.mxu0 %v35
    %55 = vmatprep.subr.mxu0 0.0
    %56 = vmatpush1.msra.mxu0 %v36
    %57 = vmatprep.subr.mxu0 0.0
    %58 = vmatpush1.msra.mxu0 0.0
    %59 = vmatprep.subr.mxu0 0.0
    %60 = vmatpush1.msra.mxu0 0.0
    %61 = vmatprep.subr.mxu0 0.0
    %62 = vmatpush1.msra.mxu0 0.0
    %63 = vmatprep.subr.mxu0 0.0
    %64 = vmatpush1.msra.mxu0 0.0
    %65 = vmatprep.subr.mxu0 0.0
    %66 = vmatpush1.msra.mxu0 0.0
    %67 = vmatprep.subr.mxu0 0.0
    %68 = vmatpush1.msra.mxu0 0.0
    %69 = vmatprep.subr.mxu0 0.0
    %70 = vmatpush1.msra.mxu0 0.0
    %71 = vmatprep.subr.mxu0 0.0
    %72 = vmatpush1.msra.mxu0 0.0
    %73 = vmatprep.subr.mxu0 0.0
    %74 = vmatpush1.msra.mxu0 0.0
    %75 = vmatprep.subr.mxu0 0.0
    %76 = vmatpush1.msra.mxu0 0.0
    %77 = vmatprep.subr.mxu0 0.0
    %78 = vmatpush1.msra.mxu0 0.0
    %79 = vmatprep.subr.mxu0 0.0
    %80 = vmatpush1.msra.mxu0 0.0
    %81 = vmatprep.subr.mxu0 0.0
    %82 = vmatpush1.msra.mxu0 0.0
    %83 = vmatprep.subr.mxu0 0.0
    %84 = vmatpush1.msra.mxu0 0.0
    %85 = vmatprep.subr.mxu0 0.0
    %86 = vmatpush1.msra.mxu0 0.0
    %87 = vmatprep.subr.mxu0 0.0
    %88 = vmatpush1.msra.mxu0 0.0
    %89 = vmatprep.subr.mxu0 0.0
    %90 = vmatpush1.msra.mxu0 0.0
    %91 = vmatprep.subr.mxu0 0.0
    %92 = vmatpush1.msra.mxu0 0.0
    %93 = vmatprep.subr.mxu0 0.0
    %94 = vmatpush1.msra.mxu0 0.0
    %95 = vmatprep.subr.mxu0 0.0
    %96 = vmatpush1.msra.mxu0 0.0
    %97 = vmatprep.subr.mxu0 0.0
    %98 = vmatpush1.msra.mxu0 0.0
    %99 = vmatprep.subr.mxu0 0.0
    %100 = vmatpush1.msra.mxu0 0.0
    %101 = vmatprep.subr.mxu0 0.0
    %102 = vmatpush1.msra.mxu0 0.0
    %103 = vmatprep.subr.mxu0 0.0
    %104 = vmatpush1.msra.mxu0 0.0
    %105 = vmatprep.subr.mxu0 0.0
    %106 = vmatpush1.msra.mxu0 0.0
    %107 = vmatprep.subr.mxu0 0.0
    %108 = vmatpush1.msra.mxu0 0.0
    %109 = vmatprep.subr.mxu0 0.0
    %110 = vmatpush1.msra.mxu0 0.0
    %111 = vmatprep.mubr.f32.mxu0 0.0
    %112 = vmatmul.mubr.f32.gmra.mrb[0].mxu0 %v45
    %v113 = vpop.f32.mrb[0].mxu0
    %v114 = vadd.f32 0.0, %v113
    %v115 = vpop.f32.mrb[0].mxu0
    %116 = vdwg.mxu0
    %v117 = vld [vmem:[%s2] sm:$0x1]
    %v119 = vsel %vm43, %v117, 0
    %121 = vmatprep.subr.mxu0 0.0
    %122 = vmatpush1.msra.mxu0 %v32
    %123 = vmatprep.subr.mxu0 0.0
    %124 = vmatpush1.msra.mxu0 %v33
    %125 = vmatprep.subr.mxu0 0.0
    %126 = vmatpush1.msra.mxu0 %v34
    %127 = vmatprep.subr.mxu0 0.0
    %128 = vmatpush1.msra.mxu0 %v35
    %129 = vmatprep.subr.mxu0 0.0
    %130 = vmatpush1.msra.mxu0 %v36
    %131 = vmatprep.subr.mxu0 0.0
    %132 = vmatpush1.msra.mxu0 0.0
    %133 = vmatprep.subr.mxu0 0.0
    %134 = vmatpush1.msra.mxu0 0.0
    %135 = vmatprep.subr.mxu0 0.0
    %136 = vmatpush1.msra.mxu0 0.0
    %137 = vmatprep.subr.mxu0 0.0
    %138 = vmatpush1.msra.mxu0 0.0
    %139 = vmatprep.subr.mxu0 0.0
    %140 = vmatpush1.msra.mxu0 0.0
    %141 = vmatprep.subr.mxu0 0.0
    %142 = vmatpush1.msra.mxu0 0.0
    %143 = vmatprep.subr.mxu0 0.0
    %144 = vmatpush1.msra.mxu0 0.0
    %145 = vmatprep.subr.mxu0 0.0
    %146 = vmatpush1.msra.mxu0 0.0
    %147 = vmatprep.subr.mxu0 0.0
    %148 = vmatpush1.msra.mxu0 0.0
    %149 = vmatprep.subr.mxu0 0.0
    %150 = vmatpush1.msra.mxu0 0.0
    %151 = vmatprep.subr.mxu0 0.0
    %152 = vmatpush1.msra.mxu0 0.0
    %153 = vmatprep.subr.mxu0 0.0
    %154 = vmatpush1.msra.mxu0 0.0
    %155 = vmatprep.subr.mxu0 0.0
    %156 = vmatpush1.msra.mxu0 0.0
    %157 = vmatprep.subr.mxu0 0.0
    %158 = vmatpush1.msra.mxu0 0.0
    %159 = vmatprep.subr.mxu0 0.0
    %160 = vmatpush1.msra.mxu0 0.0
    %161 = vmatprep.subr.mxu0 0.0
    %162 = vmatpush1.msra.mxu0 0.0
    %163 = vmatprep.subr.mxu0 0.0
    %164 = vmatpush1.msra.mxu0 0.0
    %165 = vmatprep.subr.mxu0 0.0
    %166 = vmatpush1.msra.mxu0 0.0
    %167 = vmatprep.subr.mxu0 0.0
    %168 = vmatpush1.msra.mxu0 0.0
    %169 = vmatprep.subr.mxu0 0.0
    %170 = vmatpush1.msra.mxu0 0.0
    %171 = vmatprep.subr.mxu0 0.0
    %172 = vmatpush1.msra.mxu0 0.0
    %173 = vmatprep.subr.mxu0 0.0
    %174 = vmatpush1.msra.mxu0 0.0
    %175 = vmatprep.subr.mxu0 0.0
    %176 = vmatpush1.msra.mxu0 0.0
    %177 = vmatprep.subr.mxu0 0.0
    %178 = vmatpush1.msra.mxu0 0.0
    %179 = vmatprep.subr.mxu0 0.0
    %180 = vmatpush1.msra.mxu0 0.0
    %181 = vmatprep.subr.mxu0 0.0
    %182 = vmatpush1.msra.mxu0 0.0
    %183 = vmatprep.subr.mxu0 0.0
    %184 = vmatpush1.msra.mxu0 0.0
    %185 = vmatprep.mubr.f32.mxu0 0.0
    %186 = vmatmul.mubr.f32.gmra.mrb[0].mxu0 %v119
    %v187 = vpop.f32.mrb[0].mxu0
    %v188 = vadd.f32 0.0, %v187
    %v189 = vpop.f32.mrb[0].mxu0
    %190 = vdwg.mxu0
    %v191 = vld [vmem:[%s3] sm:$0x1]
    %v193 = vsel %vm43, %v191, 0
    %195 = vmatprep.subr.mxu0 0.0
    %196 = vmatpush1.msra.mxu0 %v37
    %197 = vmatprep.subr.mxu0 0.0
    %198 = vmatpush1.msra.mxu0 %v38
    %199 = vmatprep.subr.mxu0 0.0
    %200 = vmatpush1.msra.mxu0 %v39
    %201 = vmatprep.subr.mxu0 0.0
    %202 = vmatpush1.msra.mxu0 %v40
    %203 = vmatprep.subr.mxu0 0.0
    %204 = vmatpush1.msra.mxu0 %v41
    %205 = vmatprep.subr.mxu0 0.0
    %206 = vmatpush1.msra.mxu0 0.0
    %207 = vmatprep.subr.mxu0 0.0
    %208 = vmatpush1.msra.mxu0 0.0
    %209 = vmatprep.subr.mxu0 0.0
    %210 = vmatpush1.msra.mxu0 0.0
    %211 = vmatprep.subr.mxu0 0.0
    %212 = vmatpush1.msra.mxu0 0.0
    %213 = vmatprep.subr.mxu0 0.0
    %214 = vmatpush1.msra.mxu0 0.0
    %215 = vmatprep.subr.mxu0 0.0
    %216 = vmatpush1.msra.mxu0 0.0
    %217 = vmatprep.subr.mxu0 0.0
    %218 = vmatpush1.msra.mxu0 0.0
    %219 = vmatprep.subr.mxu0 0.0
    %220 = vmatpush1.msra.mxu0 0.0
    %221 = vmatprep.subr.mxu0 0.0
    %222 = vmatpush1.msra.mxu0 0.0
    %223 = vmatprep.subr.mxu0 0.0
    %224 = vmatpush1.msra.mxu0 0.0
    %225 = vmatprep.subr.mxu0 0.0
    %226 = vmatpush1.msra.mxu0 0.0
    %227 = vmatprep.subr.mxu0 0.0
    %228 = vmatpush1.msra.mxu0 0.0
    %229 = vmatprep.subr.mxu0 0.0
    %230 = vmatpush1.msra.mxu0 0.0
    %231 = vmatprep.subr.mxu0 0.0
    %232 = vmatpush1.msra.mxu0 0.0
    %233 = vmatprep.subr.mxu0 0.0
    %234 = vmatpush1.msra.mxu0 0.0
    %235 = vmatprep.subr.mxu0 0.0
    %236 = vmatpush1.msra.mxu0 0.0
    %237 = vmatprep.subr.mxu0 0.0
    %238 = vmatpush1.msra.mxu0 0.0
    %239 = vmatprep.subr.mxu0 0.0
    %240 = vmatpush1.msra.mxu0 0.0
    %241 = vmatprep.subr.mxu0 0.0
    %242 = vmatpush1.msra.mxu0 0.0
    %243 = vmatprep.subr.mxu0 0.0
    %244 = vmatpush1.msra.mxu0 0.0
    %245 = vmatprep.subr.mxu0 0.0
    %246 = vmatpush1.msra.mxu0 0.0
    %247 = vmatprep.subr.mxu0 0.0
    %248 = vmatpush1.msra.mxu0 0.0
    %249 = vmatprep.subr.mxu0 0.0
    %250 = vmatpush1.msra.mxu0 0.0
    %251 = vmatprep.subr.mxu0 0.0
    %252 = vmatpush1.msra.mxu0 0.0
    %253 = vmatprep.subr.mxu0 0.0
    %254 = vmatpush1.msra.mxu0 0.0
    %255 = vmatprep.subr.mxu0 0.0
    %256 = vmatpush1.msra.mxu0 0.0
    %257 = vmatprep.subr.mxu0 0.0
    %258 = vmatpush1.msra.mxu0 0.0
    %259 = vmatprep.mubr.f32.mxu0 0.0
    %260 = vmatmul.mubr.f32.gmra.mrb[0].mxu0 %v193
    %v261 = vpop.f32.mrb[0].mxu0
    %v262 = vadd.f32 0.0, %v261
    %v263 = vpop.f32.mrb[0].mxu0
    %264 = vdwg.mxu0
    %v265 = vmul.f32 %v114, %v188
    %v266 = vadd.f32 %v265, %v262
    %267 = vst [vmem:[#allocation5] sm:$0x1] %v266
    // Predicated region
    $region22: #{tpu_custom_call.1} parent=1 // pred_check
      _
    $region23: #{tpu_custom_call.1} parent=1 // pred_check_branch
      %269 = sbr.rel (0) target = $region25
    $region24: #{tpu_custom_call.1} parent=1 // pred_region
      %s271 = ssub.s32 16, 16
      %272 = vsyncadd [#allocation4], %s271
      %s274 = sshll.u32 [#allocation5], 4
      %s275 = int_to_ptr.vmem [resolvable:$true] %s274
      %277 = dma.vmem_to_hbm [thread:$0]  %s275, 16, %s4, [#allocation4]
    $region25: #{tpu_custom_call.1} parent=1 // pred_fallthru
      _
    // Predicated region
    $region26: #{tpu_custom_call.1} parent=1 // pred_check
      _
    $region27: #{tpu_custom_call.1} parent=1 // pred_check_branch
      %279 = sbr.rel (0) target = $region29
    $region28: #{tpu_custom_call.1} parent=1 // pred_region
      %280 = dma.done [#allocation4], 16
    $region29: #{tpu_custom_call.1} parent=1 // pred_fallthru
      _
    %281 = vsyncpa [#allocation3], 1
    %282 = vsyncpa [#allocation4], 1

</llo_original>
